<compile_context>
chip_gen: v5e
topology: v5e:2x2
jax: 0.10.0
libtpu: 0.0.40
codegen_flags: <defaults>
</compile_context>

<pallas_src>
import functools

import jax
import jax.numpy as jnp
from jax.experimental import pallas as pl
from jax.experimental.pallas import tpu as pltpu


def _variance_kernel(x_hbm, o_ref, core_buf, top_buf, bot_buf, *,
                     window_size, pad, H, W, TH, n_th):
    # x_hbm    : (N, H, W) unpadded image, left in HBM (pl.ANY)
    # o_ref    : (1, TH, W) output row-band tile (VMEM, auto-pipelined)
    # core_buf : (TH, W)    VMEM scratch for this tile's rows
    # top_buf  : (pad, W)   VMEM scratch for the halo rows above the tile
    # bot_buf  : (pad, W)   VMEM scratch for the halo rows below the tile
    n = pl.program_id(0)
    t = pl.program_id(1)

    row0 = t * TH
    if TH % 8 == 0:
        row0 = pl.multiple_of(row0, 8)

    # ---- Stage only the rows this tile needs, straight from HBM. -------------
    pltpu.sync_copy(x_hbm.at[n, pl.ds(row0, TH), :], core_buf)
    if pad > 0:
        # Clamp the halo starts so the DMAs stay in bounds; at the image
        # top/bottom the (clamped) rows are replaced by reflected rows below.
        top_start = jnp.maximum(row0 - pad, 0)
        bot_start = jnp.minimum(row0 + TH, H - pad)
        pltpu.sync_copy(x_hbm.at[n, pl.ds(top_start, pad), :], top_buf)
        pltpu.sync_copy(x_hbm.at[n, pl.ds(bot_start, pad), :], bot_buf)

    core = core_buf[...].astype(jnp.float32)                       # (TH, W)

    # ---- Build the reflect-padded tile as a value (no HBM padded copy). ------
    if pad > 0:
        # Reflected rows (used only when the tile touches the image boundary).
        top_refl = jnp.concatenate(
            [core[pad - r:pad - r + 1, :] for r in range(pad)], axis=0)
        bot_refl = jnp.concatenate(
            [core[TH - 2 - k:TH - 1 - k, :] for k in range(pad)], axis=0)
        top_rows = jnp.where(t == 0, top_refl,
                             top_buf[...].astype(jnp.float32))
        bot_rows = jnp.where(t == n_th - 1, bot_refl,
                             bot_buf[...].astype(jnp.float32))
        xp = jnp.concatenate([top_rows, core, bot_rows], axis=0)   # (TH+2p, W)
        # Reflect padding along W from thin column slices (pad is small).
        left = [xp[:, c:c + 1] for c in range(pad, 0, -1)]
        right = [xp[:, W - 1 - c:W - c] for c in range(1, pad + 1)]
        xw = jnp.concatenate(left + [xp] + right, axis=1)          # (TH+2p, W+2p)
    else:
        xw = core

    # Square once; both the E[x] and E[x^2] paths reuse the same shifted slices.
    xw2 = xw * xw

    # ---- Separable ws x ws box sums: row pass then column pass. --------------
    # 2*(ws-1) adds per accumulator instead of ws^2 - 1 for the direct 2-D sum,
    # and only ws lane-misaligned slices per tile instead of ws^2.
    rs, rs2 = xw[:, 0:W], xw2[:, 0:W]
    for dx in range(1, window_size):
        rs = rs + xw[:, dx:dx + W]
        rs2 = rs2 + xw2[:, dx:dx + W]
    # NOTE: for large ws this column pass could be a banded-ones matmul on the
    # MXU (jnp.dot, preferred_element_type=f32) to free the VALU slot.
    cs, cs2 = rs[0:TH, :], rs2[0:TH, :]
    for dy in range(1, window_size):
        cs = cs + rs[dy:dy + TH, :]
        cs2 = cs2 + rs2[dy:dy + TH, :]

    inv = jnp.float32(1.0 / (window_size * window_size))
    mean = cs * inv
    o_ref[0] = (cs2 * inv - mean * mean).astype(o_ref.dtype)


def _choose_tile_rows(H, W, pad, max_tile_elems):
    """Pick output rows per grid step: a divisor of H, multiple of 8, VMEM-sized."""
    if H * W <= max_tile_elems:
        return H                                   # whole image in one tile
    min_th = max(8, 2 * pad)
    target = max(min_th, (max_tile_elems // max(W, 1)) // 8 * 8)
    target = min(target, H)
    th = (target // 8) * 8
    while th >= min_th:
        if H % th == 0:
            return th
        th -= 8
    # TODO(synk): support row tiles that do not divide H (masked last tile);
    # until then fall back to one tile per image for awkward heights.
    return H


def variance_filter_2d(image, window_size, *, max_tile_elems=256 * 1024):
    """JAX/Pallas equivalent of VarianceFilter2D.forward (returns NCHW, C=1)."""
    if window_size % 2 == 0:
        raise ValueError('Window size must be odd')
    pad = window_size // 2

    # Normalize input to (N, H, W) — mirrors the unsqueeze logic in forward().
    if image.ndim == 2:
        image = image[None, :, :]
    elif image.ndim == 4:
        assert image.shape[1] == 1, "only single-channel inputs supported"
        image = image[:, 0]
    N, H, W = image.shape
    if H <= pad or W <= pad:
        raise ValueError('reflect padding needs spatial dims > window_size // 2')

    TH = _choose_tile_rows(H, W, pad, max_tile_elems)
    n_th = H // TH
    halo = max(pad, 1)

    kernel = functools.partial(
        _variance_kernel, window_size=window_size, pad=pad,
        H=H, W=W, TH=TH, n_th=n_th)

    out = pl.pallas_call(
        kernel,
        out_shape=jax.ShapeDtypeStruct((N, H, W), jnp.float32),
        grid_spec=pltpu.PrefetchScalarGridSpec(
            num_scalar_prefetch=0,
            grid=(N, n_th),
            # Unpadded image stays in HBM; the kernel DMAs only its row band.
            in_specs=[pl.BlockSpec(memory_space=pl.ANY)],
            out_specs=pl.BlockSpec((1, TH, W), lambda n, t: (n, t, 0)),
            scratch_shapes=[
                pltpu.VMEM((TH, W), image.dtype),      # core rows of the band
                pltpu.VMEM((halo, W), image.dtype),    # halo rows above
                pltpu.VMEM((halo, W), image.dtype),    # halo rows below
            ],
        ),
        compiler_params=pltpu.CompilerParams(
            # No reduction axis: both grid axes are independent -> megacore.
            dimension_semantics=("parallel", "parallel"),
            vmem_limit_bytes=32 * 1024 * 1024,
        ),
    )(image)

    # PyTorch returns NCHW with C=1.
    return out[:, None, :, :]


def _variance_reference(image, window_size):
    """Pure-JAX reference (direct ws x ws window, jnp.pad reflect)."""
    pad = window_size // 2
    if image.ndim == 2:
        image = image[None]
    elif image.ndim == 4:
        image = image[:, 0]
    x = image.astype(jnp.float32)
    N, H, W = x.shape
    xp = jnp.pad(x, ((0, 0), (pad, pad), (pad, pad)), mode='reflect')
    s = jnp.zeros((N, H, W), jnp.float32)
    s2 = jnp.zeros((N, H, W), jnp.float32)
    for dy in range(window_size):
        for dx in range(window_size):
            win = xp[:, dy:dy + H, dx:dx + W]
            s = s + win
            s2 = s2 + win * win
    inv = 1.0 / (window_size * window_size)
    mean = s * inv
    return (s2 * inv - mean * mean)[:, None]


if __name__ == "__main__":
    key = jax.random.PRNGKey(0)
    k1, k2 = jax.random.split(key)

    # Small case: batch of two 16x16 images, 3x3 window (single row-band tile).
    x_small = jax.random.normal(k1, (2, 16, 16), dtype=jnp.float32)
    y_small = variance_filter_2d(x_small, window_size=3)
    jax.block_until_ready(y_small)
    assert y_small.shape == (2, 1, 16, 16), y_small.shape
    ref_small = _variance_reference(x_small, 3)
    assert jnp.allclose(y_small, ref_small, atol=1e-4, rtol=1e-4), (
        float(jnp.max(jnp.abs(y_small - ref_small))))

    # Larger case exercising the H-tiled path (TH=16 -> 4 row bands) with ws=5.
    x_tiled = jax.random.normal(k2, (1, 64, 128), dtype=jnp.float32)
    y_tiled = variance_filter_2d(x_tiled, window_size=5, max_tile_elems=2048)
    jax.block_until_ready(y_tiled)
    assert y_tiled.shape == (1, 1, 64, 128), y_tiled.shape
    ref_tiled = _variance_reference(x_tiled, 5)
    assert jnp.allclose(y_tiled, ref_tiled, atol=1e-4, rtol=1e-4), (
        float(jnp.max(jnp.abs(y_tiled - ref_tiled))))

    print("KERNEL_OK")
</pallas_src>

<mosaic_0001>
module attributes {stable_mosaic.version = 11 : i64} {
  func.func @_variance_kernel(%arg0: i32, %arg1: i32, %arg2: memref<2x16x16xf32, #tpu.memory_space<any>>, %arg3: memref<1x16x16xf32, #tpu.memory_space<vmem>>, %arg4: memref<16x16xf32, #tpu.memory_space<vmem>>, %arg5: memref<1x16xf32, #tpu.memory_space<vmem>>, %arg6: memref<1x16xf32, #tpu.memory_space<vmem>>) attributes {dimension_semantics = [#tpu.dimension_semantics<parallel>, #tpu.dimension_semantics<parallel>], iteration_bounds = array<i64: 2, 1>, scalar_prefetch = 0 : i64, scratch_operands = 3 : i64, tpu.core_type = #tpu.core_type<tc>, window_params = [{}, {transform_indices = @transform_1, window_bounds = array<i64: 1, 16, 16>}]} {
    %c16_i32 = arith.constant 16 : i32
    %0 = arith.muli %arg1, %c16_i32 : i32
    %1 = tpu.assume_multiple %0, 8 : i32
    "tpu.region"() ({
      %49 = tpu.sem_alloc : memref<!tpu.dma_semaphore, #tpu.memory_space<semaphore_mem>>
      %c0_i32_12 = arith.constant 0 : i32
      %50 = tpu.memref_slice %arg2[%arg0, %1, %c0_i32_12] : memref<2x16x16xf32, #tpu.memory_space<any>> -> memref<1x16x16xf32, #tpu.memory_space<any>>
      %51 = tpu.memref_squeeze %50 : memref<1x16x16xf32, #tpu.memory_space<any>> -> memref<16x16xf32, #tpu.memory_space<any>>
      tpu.enqueue_dma source(%51 : memref<16x16xf32, #tpu.memory_space<any>>) target(%arg4 : memref<16x16xf32, #tpu.memory_space<vmem>>) target_semaphore(%49 : memref<!tpu.dma_semaphore, #tpu.memory_space<semaphore_mem>>)
      %c0_i32_13 = arith.constant 0 : i32
      %52 = tpu.memref_slice %arg2[%arg0, %1, %c0_i32_13] : memref<2x16x16xf32, #tpu.memory_space<any>> -> memref<1x16x16xf32, #tpu.memory_space<any>>
      %53 = tpu.memref_squeeze %52 : memref<1x16x16xf32, #tpu.memory_space<any>> -> memref<16x16xf32, #tpu.memory_space<any>>
      tpu.wait_dma2 semaphore(%49 : memref<!tpu.dma_semaphore, #tpu.memory_space<semaphore_mem>>) src(%53 : memref<16x16xf32, #tpu.memory_space<any>>) dst(%arg4 : memref<16x16xf32, #tpu.memory_space<vmem>>)
      tpu.yield
    }) : () -> ()
    %c1_i32 = arith.constant 1 : i32
    %2 = arith.subi %1, %c1_i32 : i32
    %c0_i32 = arith.constant 0 : i32
    %3 = arith.maxsi %2, %c0_i32 : i32
    %c16_i32_0 = arith.constant 16 : i32
    %4 = arith.addi %1, %c16_i32_0 : i32
    %c15_i32 = arith.constant 15 : i32
    %5 = arith.minsi %4, %c15_i32 : i32
    "tpu.region"() ({
      %49 = tpu.sem_alloc : memref<!tpu.dma_semaphore, #tpu.memory_space<semaphore_mem>>
      %c0_i32_12 = arith.constant 0 : i32
      %50 = tpu.memref_slice %arg2[%arg0, %3, %c0_i32_12] : memref<2x16x16xf32, #tpu.memory_space<any>> -> memref<1x1x16xf32, #tpu.memory_space<any>>
      %51 = tpu.memref_squeeze %50 : memref<1x1x16xf32, #tpu.memory_space<any>> -> memref<1x16xf32, #tpu.memory_space<any>>
      tpu.enqueue_dma source(%51 : memref<1x16xf32, #tpu.memory_space<any>>) target(%arg5 : memref<1x16xf32, #tpu.memory_space<vmem>>) target_semaphore(%49 : memref<!tpu.dma_semaphore, #tpu.memory_space<semaphore_mem>>)
      %c0_i32_13 = arith.constant 0 : i32
      %52 = tpu.memref_slice %arg2[%arg0, %3, %c0_i32_13] : memref<2x16x16xf32, #tpu.memory_space<any>> -> memref<1x1x16xf32, #tpu.memory_space<any>>
      %53 = tpu.memref_squeeze %52 : memref<1x1x16xf32, #tpu.memory_space<any>> -> memref<1x16xf32, #tpu.memory_space<any>>
      tpu.wait_dma2 semaphore(%49 : memref<!tpu.dma_semaphore, #tpu.memory_space<semaphore_mem>>) src(%53 : memref<1x16xf32, #tpu.memory_space<any>>) dst(%arg5 : memref<1x16xf32, #tpu.memory_space<vmem>>)
      tpu.yield
    }) : () -> ()
    "tpu.region"() ({
      %49 = tpu.sem_alloc : memref<!tpu.dma_semaphore, #tpu.memory_space<semaphore_mem>>
      %c0_i32_12 = arith.constant 0 : i32
      %50 = tpu.memref_slice %arg2[%arg0, %5, %c0_i32_12] : memref<2x16x16xf32, #tpu.memory_space<any>> -> memref<1x1x16xf32, #tpu.memory_space<any>>
      %51 = tpu.memref_squeeze %50 : memref<1x1x16xf32, #tpu.memory_space<any>> -> memref<1x16xf32, #tpu.memory_space<any>>
      tpu.enqueue_dma source(%51 : memref<1x16xf32, #tpu.memory_space<any>>) target(%arg6 : memref<1x16xf32, #tpu.memory_space<vmem>>) target_semaphore(%49 : memref<!tpu.dma_semaphore, #tpu.memory_space<semaphore_mem>>)
      %c0_i32_13 = arith.constant 0 : i32
      %52 = tpu.memref_slice %arg2[%arg0, %5, %c0_i32_13] : memref<2x16x16xf32, #tpu.memory_space<any>> -> memref<1x1x16xf32, #tpu.memory_space<any>>
      %53 = tpu.memref_squeeze %52 : memref<1x1x16xf32, #tpu.memory_space<any>> -> memref<1x16xf32, #tpu.memory_space<any>>
      tpu.wait_dma2 semaphore(%49 : memref<!tpu.dma_semaphore, #tpu.memory_space<semaphore_mem>>) src(%53 : memref<1x16xf32, #tpu.memory_space<any>>) dst(%arg6 : memref<1x16xf32, #tpu.memory_space<vmem>>)
      tpu.yield
    }) : () -> ()
    %c0 = arith.constant 0 : index
    %c0_1 = arith.constant 0 : index
    %6 = vector.load %arg4[%c0, %c0_1] : memref<16x16xf32, #tpu.memory_space<vmem>>, vector<16x16xf32>
    %7 = vector.extract_strided_slice %6 {offsets = [1, 0], sizes = [1, 16], strides = [1, 1]} : vector<16x16xf32> to vector<1x16xf32>
    %8 = vector.extract_strided_slice %6 {offsets = [14, 0], sizes = [1, 16], strides = [1, 1]} : vector<16x16xf32> to vector<1x16xf32>
    %c0_i32_2 = arith.constant 0 : i32
    %9 = arith.cmpi eq, %arg1, %c0_i32_2 : i32
    %c0_3 = arith.constant 0 : index
    %c0_4 = arith.constant 0 : index
    %10 = vector.load %arg5[%c0_3, %c0_4] : memref<1x16xf32, #tpu.memory_space<vmem>>, vector<1x16xf32>
    %11 = arith.select %9, %7, %10 : vector<1x16xf32>
    %c0_i32_5 = arith.constant 0 : i32
    %12 = arith.cmpi eq, %arg1, %c0_i32_5 : i32
    %c0_6 = arith.constant 0 : index
    %c0_7 = arith.constant 0 : index
    %13 = vector.load %arg6[%c0_6, %c0_7] : memref<1x16xf32, #tpu.memory_space<vmem>>, vector<1x16xf32>
    %14 = arith.select %12, %8, %13 : vector<1x16xf32>
    %15 = tpu.concatenate %11, %6, %14 in 0 : vector<1x16xf32>, vector<16x16xf32>, vector<1x16xf32> -> vector<18x16xf32>
    %16 = vector.extract_strided_slice %15 {offsets = [0, 1], sizes = [18, 1], strides = [1, 1]} : vector<18x16xf32> to vector<18x1xf32>
    %17 = vector.extract_strided_slice %15 {offsets = [0, 14], sizes = [18, 1], strides = [1, 1]} : vector<18x16xf32> to vector<18x1xf32>
    %18 = tpu.concatenate %16, %15, %17 in 1 : vector<18x1xf32>, vector<18x16xf32>, vector<18x1xf32> -> vector<18x18xf32>
    %19 = arith.mulf %18, %18 : vector<18x18xf32>
    %20 = vector.extract_strided_slice %18 {offsets = [0, 0], sizes = [18, 16], strides = [1, 1]} : vector<18x18xf32> to vector<18x16xf32>
    %21 = vector.extract_strided_slice %19 {offsets = [0, 0], sizes = [18, 16], strides = [1, 1]} : vector<18x18xf32> to vector<18x16xf32>
    %22 = vector.extract_strided_slice %18 {offsets = [0, 1], sizes = [18, 16], strides = [1, 1]} : vector<18x18xf32> to vector<18x16xf32>
    %23 = arith.addf %20, %22 : vector<18x16xf32>
    %24 = vector.extract_strided_slice %19 {offsets = [0, 1], sizes = [18, 16], strides = [1, 1]} : vector<18x18xf32> to vector<18x16xf32>
    %25 = arith.addf %21, %24 : vector<18x16xf32>
    %26 = vector.extract_strided_slice %18 {offsets = [0, 2], sizes = [18, 16], strides = [1, 1]} : vector<18x18xf32> to vector<18x16xf32>
    %27 = arith.addf %23, %26 : vector<18x16xf32>
    %28 = vector.extract_strided_slice %19 {offsets = [0, 2], sizes = [18, 16], strides = [1, 1]} : vector<18x18xf32> to vector<18x16xf32>
    %29 = arith.addf %25, %28 : vector<18x16xf32>
    %30 = vector.extract_strided_slice %27 {offsets = [0, 0], sizes = [16, 16], strides = [1, 1]} : vector<18x16xf32> to vector<16x16xf32>
    %31 = vector.extract_strided_slice %29 {offsets = [0, 0], sizes = [16, 16], strides = [1, 1]} : vector<18x16xf32> to vector<16x16xf32>
    %32 = vector.extract_strided_slice %27 {offsets = [1, 0], sizes = [16, 16], strides = [1, 1]} : vector<18x16xf32> to vector<16x16xf32>
    %33 = arith.addf %30, %32 : vector<16x16xf32>
    %34 = vector.extract_strided_slice %29 {offsets = [1, 0], sizes = [16, 16], strides = [1, 1]} : vector<18x16xf32> to vector<16x16xf32>
    %35 = arith.addf %31, %34 : vector<16x16xf32>
    %36 = vector.extract_strided_slice %27 {offsets = [2, 0], sizes = [16, 16], strides = [1, 1]} : vector<18x16xf32> to vector<16x16xf32>
    %37 = arith.addf %33, %36 : vector<16x16xf32>
    %38 = vector.extract_strided_slice %29 {offsets = [2, 0], sizes = [16, 16], strides = [1, 1]} : vector<18x16xf32> to vector<16x16xf32>
    %39 = arith.addf %35, %38 : vector<16x16xf32>
    %cst = arith.constant 0.111111112 : f32
    %40 = vector.broadcast %cst : f32 to vector<16x16xf32>
    %41 = arith.mulf %37, %40 : vector<16x16xf32>
    %cst_8 = arith.constant 0.111111112 : f32
    %42 = vector.broadcast %cst_8 : f32 to vector<16x16xf32>
    %43 = arith.mulf %39, %42 : vector<16x16xf32>
    %44 = arith.mulf %41, %41 : vector<16x16xf32>
    %45 = arith.subf %43, %44 : vector<16x16xf32>
    %c0_9 = arith.constant 0 : index
    %c0_10 = arith.constant 0 : index
    %c0_11 = arith.constant 0 : index
    %46 = vector.load %arg3[%c0_9, %c0_10, %c0_11] : memref<1x16x16xf32, #tpu.memory_space<vmem>>, vector<1x16x16xf32>
    %47 = vector.shape_cast %46 : vector<1x16x16xf32> to vector<16x16xf32>
    %48 = vector.shape_cast %45 : vector<16x16xf32> to vector<1x16x16xf32>
    tpu.vector_store %arg3[%c0_9, %c0_10, %c0_11], %48 {strides = array<i32>} : memref<1x16x16xf32, #tpu.memory_space<vmem>>, vector<1x16x16xf32>,
    return
  }
  func.func @transform_1(%arg0: i32, %arg1: i32) -> (i32, i32, i32) {
    %c0_i32 = arith.constant 0 : i32
    %c0_i32_0 = arith.constant 0 : i32
    return %arg0, %arg1, %c0_i32 : i32, i32, i32
  }
}

</mosaic_0001>

<llo_original>
// kernel: tpu_custom_call.1
$region0: #{tpu_custom_call.1}
  #allocation0 [shape = 'u32[]', space=smem, size = 0x4, offset = 0x4, fixed_abs, tag = 'smem constant byte address 0x4 - core index']
  #allocation1 [shape = 'u32[72,128]{1,0:T(1,128)}', space=vmem, size = 0x9000, scoped, tag = 'internal scratch']
  #allocation2 [shape = 'f32[16,16]{1,0:T(8,128)}', space=vmem, size = 0x2000, scoped, tag = 'scratch operand']
  #allocation3 [shape = 'f32[1,16]{1,0:T(1,128)}', space=vmem, size = 0x200, scoped, tag = 'scratch operand']
  #allocation4 [shape = 'f32[1,16]{1,0:T(1,128)}', space=vmem, size = 0x200, scoped, tag = 'scratch operand']
  #allocation8 [shape = 's32[]', space=sflag, size = 0x4, offset = 0, fixed_abs, tag = 'sflag constant byte address 0x0 - dummy sync flag']
  #allocation9 [shape = 's32[]', space=sflag, size = 0x4, offset = 0, fixed_abs, tag = 'sflag constant byte address 0x0 - dummy sync flag']
  #allocation10 [shape = 'u32[]', space=smem, size = 0x4, offset = 0x44, fixed_abs, tag = 'smem constant byte address 0x44 - assertion arg 0']
  #allocation11 [shape = 'u32[]', space=smem, size = 0x4, offset = 0x48, fixed_abs, tag = 'smem constant byte address 0x48 - assertion arg 1']
  #allocation13 [shape = 's32[]', space=sflag, size = 0x4, offset = 0, fixed_abs, tag = 'sflag constant byte address 0x0 - dummy sync flag']
  #allocation14 [shape = 's32[]', space=sflag, size = 0x4, offset = 0, fixed_abs, tag = 'sflag constant byte address 0x0 - dummy sync flag']
  #allocation16 [shape = 's32[]', space=sflag, size = 0x4, offset = 0, fixed_abs, tag = 'sflag constant byte address 0x0 - dummy sync flag']
  #allocation17 [shape = 's32[]', space=sflag, size = 0x4, offset = 0, fixed_abs, tag = 'sflag constant byte address 0x0 - dummy sync flag']
  %s0 = inlined_call_operand.hbm [shape: f32[2,16,16], index: 0, kind: input, shape index: {}]
  %s1 = inlined_call_operand.hbm [shape: f32[2,16,16], index: 1, kind: output, shape index: {}]
  %s2 = sld [smem:[#allocation0]]
  $region40: #{tpu_custom_call.1} parent=0
    _
  %s4 = ssub.s32 1, %s2
  %s5 = scalar_select 0, %s4, %s2
  $region1: #{tpu_custom_call.1} parent=0
    #allocation5 [shape = 'u8[16384]{0}', space=vmem, size = 0x4000, scoped, tag = 'output window, operand 0']
    #allocation6 [shape = 's32[2]{0}', space=sflag, size = 0x8, scoped, tag = 'scoped memory for tpu_custom_call.1']
    %6 = vsyncpa [#allocation6], 0
    %s7 = scalar_lea.sflag [#allocation6], 1
    %8 = vsyncpa %s7, 0
    loop: start=0, step=1, limit=3
    $region2: #{tpu_custom_call.1} parent=1 // loop_pre_header
      _
    $region3: #{tpu_custom_call.1} parent=1 // loop_header
      %s10 = sphi 0, %s14
      %p11 = scmp.ge.s32.totalorder %s10, 3
      %s16 = sphi 0, %s26
      %s17 = sphi 0, %s22
      %s18 = sphi 0, %s16
      %s19 = sphi 0, %s17
      %s31 = sphi 0, %s33
      %s34 = sphi 0, %s31
      %s44 = sphi 0, %s34
    $region4: #{tpu_custom_call.1} parent=1 // loop_header_branch
      %13 = sbr.rel (%p11) target = $region8
    $region5: #{tpu_custom_call.1} parent=1 // loop_body
      %s15 = ssub.s32 %s10, 1
      %s20 = sadd.s32 1, %s17
      %p21 = scmp.ge.s32.totalorder %s20, 1
      %s22 = scalar_select %p21, 0, %s20
      %s23 = sadd.s32 1, %s16
      %s24 = scalar_select %p21, %s23, %s16
      %p25 = scmp.ge.s32.totalorder %s24, 2
      %s26 = scalar_select %p25, 0, %s24
      %s27 = ssub.s32 %s16, %s26
      %s28 = ssub.s32 %s17, %s22
      %s29 = sor.u32 %s27, %s28
      %p30 = scmp.eq.s32.totalorder %s29, 0
      %s32 = sadd.s32 %s31, 1
      %s33 = scalar_select %p30, %s31, %s32
      %p35 = pneg %p30
      %p36 = scmp.eq.s32.totalorder %s10, 1
      %p37 = por %p35, %p36
      %p38 = scmp.ne.s32.totalorder %s31, %s34
      %p39 = scmp.eq.s32.totalorder %s10, 0
      %p40 = por %p38, %p39
      %p41 = scmp.ne.s32.totalorder %s31, %s34
      %p42 = scmp.eq.s32.totalorder %s15, 1
      %p43 = por %p41, %p42
      %p45 = scmp.ne.s32.totalorder %s34, %s44
      %p46 = scmp.eq.s32.totalorder %s15, 0
      %p47 = por %p45, %p46
      %p48 = scmp.lt.s32.totalorder %s10, 2
      // Predicated region
      $region9: #{tpu_custom_call.1} parent=5 // pred_check
        %p49 = pneg %p48
      $region10: #{tpu_custom_call.1} parent=5 // pred_check_branch
        %51 = sbr.rel (%p49) target = $region12
      $region11: #{tpu_custom_call.1} parent=5 // pred_region
        %p52 = pneg %p40
        %p53 = pneg %p37
        %s54 = sand.u32 %s31, 1
        %s55 = scalar_lea.sflag [#allocation6], %s54
        %s56 = sand.u32 %s31, 1
        %s57 = smul.addr %s56, 16
        %s58 = scalar_lea.vmem [#allocation5], %s57
        %s59 = smul.u32 2, %s17
        %s60 = smul.u32 %s17, 16
        $region13: #{tpu_custom_call.1} parent=11
          #allocation7 [shape = 's32[1]{0}', space=sflag, size = 0x4, scoped, tag = 'scoped memory for tpu_custom_call.1']
          %s61 = smul.u32 %s16, 16
          %s62 = sadd.s32 %s60, %s61
          %s63 = scalar_lea.hbm %s0, %s62
          // Predicated region
          $region14: #{tpu_custom_call.1} parent=13 // pred_check
            _
          $region15: #{tpu_custom_call.1} parent=13 // pred_check_branch
            %65 = sbr.rel target = $region17
          $region16: #{tpu_custom_call.1} parent=13 // pred_region
            %66 = sst [smem:[#allocation10]] [#allocation9]
            %67 = sst [smem:[#allocation11]] [#allocation8]
          $region17: #{tpu_custom_call.1} parent=13 // pred_fallthru
            _
          %69 = shalt.err (0)
          %s71 = sshll.u32 %s63, 4
          %s72 = int_to_ptr.hbm [resolvable:$true] %s71
          %s73 = sshll.u32 [#allocation2], 4
          %s74 = int_to_ptr.vmem [resolvable:$true] %s73
          %76 = dma.hbm_to_vmem [thread:$0]  %s72, 256, %s74, [#allocation7]
          %s77 = smul.u32 16, 1
          %s78 = sshll.u32 %s77, 4
          %79 = dma.done [#allocation7], %s78
        %s80 = ssub.s32 %s60, 1
        %p81 = scmp.gt.s32.totalorder %s80, 0
        %s82 = scalar_select %p81, %s80, 0
        %s83 = sadd.s32 %s60, 16
        %p84 = scmp.lt.s32.totalorder %s83, 15
        %s85 = scalar_select %p84, %s83, 15
        $region18: #{tpu_custom_call.1} parent=11
          #allocation12 [shape = 's32[1]{0}', space=sflag, size = 0x4, scoped, tag = 'scoped memory for tpu_custom_call.1']
          %s86 = smul.u32 %s16, 16
          %s87 = sadd.s32 %s82, %s86
          %s88 = scalar_lea.hbm %s0, %s87
          // Predicated region
          $region19: #{tpu_custom_call.1} parent=18 // pred_check
            _
          $region20: #{tpu_custom_call.1} parent=18 // pred_check_branch
            %90 = sbr.rel target = $region22
          $region21: #{tpu_custom_call.1} parent=18 // pred_region
            %91 = sst [smem:[#allocation10]] [#allocation14]
            %92 = sst [smem:[#allocation11]] [#allocation13]
          $region22: #{tpu_custom_call.1} parent=18 // pred_fallthru
            _
          %94 = shalt.err (0)
          %s96 = sshll.u32 %s88, 4
          %s97 = int_to_ptr.hbm [resolvable:$true] %s96
          %s98 = sshll.u32 [#allocation3], 4
          %s99 = int_to_ptr.vmem [resolvable:$true] %s98
          %101 = dma.hbm_to_vmem [thread:$0]  %s97, 16, %s99, [#allocation12]
          %s102 = smul.u32 1, 1
          %s103 = sshll.u32 %s102, 4
          %104 = dma.done [#allocation12], %s103
        $region23: #{tpu_custom_call.1} parent=11
          #allocation15 [shape = 's32[1]{0}', space=sflag, size = 0x4, scoped, tag = 'scoped memory for tpu_custom_call.1']
          %s105 = smul.u32 %s16, 16
          %s106 = sadd.s32 %s85, %s105
          %s107 = scalar_lea.hbm %s0, %s106
          // Predicated region
          $region24: #{tpu_custom_call.1} parent=23 // pred_check
            _
          $region25: #{tpu_custom_call.1} parent=23 // pred_check_branch
            %109 = sbr.rel target = $region27
          $region26: #{tpu_custom_call.1} parent=23 // pred_region
            %110 = sst [smem:[#allocation10]] [#allocation17]
            %111 = sst [smem:[#allocation11]] [#allocation16]
          $region27: #{tpu_custom_call.1} parent=23 // pred_fallthru
            _
          %113 = shalt.err (0)
          %s115 = sshll.u32 %s107, 4
          %s116 = int_to_ptr.hbm [resolvable:$true] %s115
          %s117 = sshll.u32 [#allocation4], 4
          %s118 = int_to_ptr.vmem [resolvable:$true] %s117
          %120 = dma.hbm_to_vmem [thread:$0]  %s116, 16, %s118, [#allocation15]
          %s121 = smul.u32 1, 1
          %s122 = sshll.u32 %s121, 4
          %123 = dma.done [#allocation15], %s122
        %v124 = vld [vmem:[#allocation2] sm:$0xff]
        %v125 = vld [vmem:[#allocation2 + $0x8] sm:$0xff]
        %p126 = scmp.eq.s32.totalorder %s17, 0
        %v127 = vld [vmem:[#allocation3] sm:$0x1]
        %s128 = scalar_select %p126, 1, 0
        %v129 = vstv %s128
        %vm130 = vcmp.eq.s32.totalorder %v129, 1
        %v132 = vperm.slane %v127, 0
        %v134 = vsel %vm130, %v124, %v132
        %v135 = vld [vmem:[#allocation4] sm:$0x1]
        %v137 = vperm.slane %v135, 0
        %v139 = vsel %vm130, %v125, %v137
        %v141 = vrot.slane %v134, 1
        %vm145 = vcmask 1040384
        %v146 = vrot.slane %v124, 7
        %v147 = vrot.slane %v125, 7
        %v148 = vsel %vm145, %v146, %v147
        %v152 = vrot.slane %v139, 5
        %v154 = vsel %vm145, %v141, %v146
        %v155 = vsel %vm145, %v147, %v152
        %158 = vrot.lane.b32.xlu0 %v154, 127
        %v159 = vpop.permute.xlu0 %158
        %160 = vrot.lane.b32.xlu0 %v148, 127
        %v161 = vpop.permute.xlu0 %160
        %162 = vrot.lane.b32.xlu0 %v155, 127
        %v163 = vpop.permute.xlu0 %162
        %167 = vrot.lane.b32.xlu0 %v154, 1
        %v168 = vpop.permute.xlu0 %167
        %169 = vrot.lane.b32.xlu0 %v148, 1
        %v170 = vpop.permute.xlu0 %169
        %171 = vrot.lane.b32.xlu0 %v155, 1
        %v172 = vpop.permute.xlu0 %171
        %176 = vrot.lane.b32.xlu0 %v154, 3
        %v177 = vpop.permute.xlu0 %176
        %178 = vrot.lane.b32.xlu0 %v148, 3
        %v179 = vpop.permute.xlu0 %178
        %180 = vrot.lane.b32.xlu0 %v155, 3
        %v181 = vpop.permute.xlu0 %180
        %vm185 = vcmask 7168
        %v186 = vsel %vm185, %v159, %v168
        %v187 = vsel %vm185, %v161, %v170
        %v188 = vsel %vm185, %v163, %v172
        %vm189 = vcmask 138240
        %v190 = vsel %vm189, %v186, %v177
        %v191 = vsel %vm189, %v187, %v179
        %v192 = vsel %vm189, %v188, %v181
        %v193 = vmul.f32 %v190, %v190
        %v194 = vmul.f32 %v191, %v191
        %v195 = vmul.f32 %v192, %v192
        %199 = vrot.lane.b32.xlu0 %v190, 127
        %v200 = vpop.permute.xlu0 %199
        %201 = vrot.lane.b32.xlu0 %v191, 127
        %v202 = vpop.permute.xlu0 %201
        %203 = vrot.lane.b32.xlu0 %v192, 127
        %v204 = vpop.permute.xlu0 %203
        %v208 = vadd.f32 %v190, %v200
        %v209 = vadd.f32 %v191, %v202
        %v210 = vadd.f32 %v192, %v204
        %214 = vrot.lane.b32.xlu0 %v193, 127
        %v215 = vpop.permute.xlu0 %214
        %216 = vrot.lane.b32.xlu0 %v194, 127
        %v217 = vpop.permute.xlu0 %216
        %218 = vrot.lane.b32.xlu0 %v195, 127
        %v219 = vpop.permute.xlu0 %218
        %v223 = vadd.f32 %v193, %v215
        %v224 = vadd.f32 %v194, %v217
        %v225 = vadd.f32 %v195, %v219
        %226 = vrot.lane.b32.xlu0 %v190, 126
        %v227 = vpop.permute.xlu0 %226
        %228 = vrot.lane.b32.xlu0 %v191, 126
        %v229 = vpop.permute.xlu0 %228
        %230 = vrot.lane.b32.xlu0 %v192, 126
        %v231 = vpop.permute.xlu0 %230
        %v235 = vadd.f32 %v208, %v227
        %v236 = vadd.f32 %v209, %v229
        %v237 = vadd.f32 %v210, %v231
        %238 = vrot.lane.b32.xlu0 %v193, 126
        %v239 = vpop.permute.xlu0 %238
        %240 = vrot.lane.b32.xlu0 %v194, 126
        %v241 = vpop.permute.xlu0 %240
        %242 = vrot.lane.b32.xlu0 %v195, 126
        %v243 = vpop.permute.xlu0 %242
        %v247 = vadd.f32 %v223, %v239
        %v248 = vadd.f32 %v224, %v241
        %v249 = vadd.f32 %v225, %v243
        %vm253 = vcmask 1046528
        %v254 = vrot.slane %v235, 1
        %v255 = vrot.slane %v236, 1
        %v256 = vsel %vm253, %v254, %v255
        %v257 = vrot.slane %v237, 1
        %v258 = vsel %vm253, %v255, %v257
        %v261 = vadd.f32 %v235, %v256
        %v262 = vadd.f32 %v236, %v258
        %v266 = vrot.slane %v247, 1
        %v267 = vrot.slane %v248, 1
        %v268 = vsel %vm253, %v266, %v267
        %v269 = vrot.slane %v249, 1
        %v270 = vsel %vm253, %v267, %v269
        %v273 = vadd.f32 %v247, %v268
        %v274 = vadd.f32 %v248, %v270
        %vm275 = vcmask 1045504
        %v276 = vrot.slane %v235, 2
        %v277 = vrot.slane %v236, 2
        %v278 = vsel %vm275, %v276, %v277
        %v279 = vrot.slane %v237, 2
        %v280 = vsel %vm275, %v277, %v279
        %v283 = vadd.f32 %v261, %v278
        %v284 = vadd.f32 %v262, %v280
        %v285 = vrot.slane %v247, 2
        %v286 = vrot.slane %v248, 2
        %v287 = vsel %vm275, %v285, %v286
        %v288 = vrot.slane %v249, 2
        %v289 = vsel %vm275, %v286, %v288
        %v292 = vadd.f32 %v273, %v287
        %v293 = vadd.f32 %v274, %v289
        %v294 = vmul.f32 %v283, 0.11111111
        %v295 = vmul.f32 %v284, 0.11111111
        %v296 = vmul.f32 %v292, 0.11111111
        %v297 = vmul.f32 %v293, 0.11111111
        %v298 = vmul.f32 %v294, %v294
        %v299 = vmul.f32 %v295, %v295
        %v300 = vsub.f32 %v296, %v298
        %v301 = vsub.f32 %v297, %v299
        %vm302 = vcmask 130048
        %303 = vst.msk [vmem:[%s58] sm:$0xff] %vm302, %v300
        %304 = vst.msk [vmem:[%s58 + $0x8] sm:$0xff] %vm302, %v301
        %s305 = sand.u32 %s31, 1
        %s306 = scalar_lea.sflag [#allocation6], %s305
        %s307 = sand.u32 %s31, 1
        %s308 = smul.addr %s307, 16
        %s309 = scalar_lea.vmem [#allocation5], %s308
        // Predicated region
        $region28: #{tpu_custom_call.1} parent=11 // pred_check
          %p310 = pneg %p37
        $region29: #{tpu_custom_call.1} parent=11 // pred_check_branch
          %312 = sbr.rel (%p310) target = $region31
        $region30: #{tpu_custom_call.1} parent=11 // pred_region
          %s313 = smul.u32 2, %s17
          %315 = vsyncadd %s306, 0
          %s316 = smul.addr %s16, 2
          %s317 = sadd.s32 %s313, %s316
          %s318 = smul.addr %s317, 8
          %s319 = scalar_lea.hbm %s1, %s318
          %s320 = sshll.u32 %s309, 4
          %s321 = int_to_ptr.vmem [resolvable:$true] %s320
          %s322 = sshll.u32 %s319, 4
          %s323 = int_to_ptr.hbm [resolvable:$true] %s322
          %328 = dma.vmem_to_hbm [thread:$0]  %s321, 256, %s323, %s306, 128, 128, 8
        $region31: #{tpu_custom_call.1} parent=11 // pred_fallthru
          _
      $region12: #{tpu_custom_call.1} parent=5 // pred_fallthru
        _
      %p329 = scmp.le.s32.totalorder 1, %s10
      // Predicated region
      $region32: #{tpu_custom_call.1} parent=5 // pred_check
        %p330 = pneg %p329
      $region33: #{tpu_custom_call.1} parent=5 // pred_check_branch
        %332 = sbr.rel (%p330) target = $region35
      $region34: #{tpu_custom_call.1} parent=5 // pred_region
        %s333 = ssub.s32 %s10, 1
        // Predicated region
        $region36: #{tpu_custom_call.1} parent=34 // pred_check
          %p334 = pneg %p43
        $region37: #{tpu_custom_call.1} parent=34 // pred_check_branch
          %336 = sbr.rel (%p334) target = $region39
        $region38: #{tpu_custom_call.1} parent=34 // pred_region
          %s337 = sand.u32 %s34, 1
          %s338 = scalar_lea.sflag [#allocation6], %s337
          %s339 = sand.u32 %s34, 1
          %s340 = smul.addr %s339, 16
          %s341 = scalar_lea.vmem [#allocation5], %s340
          %343 = dma.done %s338, 256
        $region39: #{tpu_custom_call.1} parent=34 // pred_fallthru
          _
      $region35: #{tpu_custom_call.1} parent=5 // pred_fallthru
        _
    $region6: #{tpu_custom_call.1} parent=1 // loop_footer
      %s14 = sadd.s32 1, %s10
    $region7: #{tpu_custom_call.1} parent=1 // loop_footer_branch
      %9 = sbr.rel target = $region3
    $region8: #{tpu_custom_call.1} parent=1 // loop_exit
      _
    %344 = vsyncpa [#allocation6], 1
    %s345 = scalar_lea.sflag [#allocation6], 1
    %346 = vsyncpa %s345, 1

</llo_original>
